<compile_context>
chip_gen: v5e
topology: v5e:2x2
jax: 0.10.0
libtpu: 0.0.40
codegen_flags: <defaults>
</compile_context>

<pallas_src>
import jax
import jax.numpy as jnp
from jax.experimental import pallas as pl
from jax.experimental.pallas import tpu as pltpu


_PALLAS_MIN_BYTES = 1 << 20      # below this, jnp.pad + XLA fusion wins outright
_VMEM_BLOCK_BUDGET = 24 << 20    # 2*(in_block + out_block) padded must fit here (v7x safe)
_VMEM_LIMIT_BYTES = 32 << 20     # scoped VMEM limit handed to Mosaic
_TARGET_BLOCK_BYTES = 4 << 20    # ~4 MiB of real input data per grid step


def _reflect_indices(length, before, after):
    """Source index for each output position of a (possibly negative) reflect pad.

    Negative `before`/`after` behave as crops, matching F.pad(mode='reflect')
    with negative padding values.
    """
    idx = []
    for i in range(length + before + after):
        j = i - before
        if j < 0:
            j = -j
        elif j >= length:
            j = 2 * (length - 1) - j
        idx.append(j)
    return idx


def _runs(idx):
    """Decompose a source-index list into maximal stride-1 runs.

    Returns (dst_start, src_start, length) tuples such that
    out[dst_start : dst_start + length] = in[src_start : src_start + length].
    """
    runs = []
    start = 0
    for i in range(1, len(idx) + 1):
        if i == len(idx) or idx[i] != idx[i - 1] + 1:
            runs.append((start, idx[start], i - start))
            start = i
    return runs


def _round_up(v, m):
    return -(-v // m) * m


def _pick_batch_tile(B, H, W, H_out, W_out, itemsize):
    """Leading-dim (N*C) tile size for the grid.

    Largest divisor of B whose real input bytes stay near _TARGET_BLOCK_BYTES
    and whose double-buffered padded (sublane->8, lane->128) in+out blocks fit
    _VMEM_BLOCK_BUDGET.  Prefers a grid of >= 2 steps.  Returns None if even
    tb=1 cannot fit VMEM (caller falls back to jnp.pad).
    """
    def padded(tb, h, w):
        return tb * _round_up(h, 8) * _round_up(w, 128) * itemsize

    def fits(tb):
        return 2 * (padded(tb, H, W) + padded(tb, H_out, W_out)) <= _VMEM_BLOCK_BUDGET

    divisors = [d for d in range(1, B + 1) if B % d == 0]
    cand = [d for d in divisors
            if fits(d) and d * H * W * itemsize <= _TARGET_BLOCK_BYTES]
    if not cand:
        cand = [d for d in divisors if fits(d)]
        if not cand:
            return None
    tb = max(cand)
    if tb == B and B > 1 and B % 2 == 0:
        tb = B // 2   # guarantee >= 2 grid steps (megacore + double-buffering)
    return tb


def _make_pad_kernel(row_runs, col_runs):
    """Reflect-pad / crop both spatial axes with static sliced VMEM copies.

    Blocks (tb = leading N*C tile):
      x_ref: (tb, H,     W)
      o_ref: (tb, H_out, W_out)
    No scratch, no MXU: Stage A copies each stride-1 row run of x directly
    into the main (interior) column band of o; Stage B fills the reflected
    column strips from o's already-written interior (all rows in one copy).
    All bounds are Python ints -> plain copies.
    """
    main_i = max(range(len(col_runs)), key=lambda i: col_runs[i][2])
    mcd, mcs, mcn = col_runs[main_i]
    side_cols = [r for i, r in enumerate(col_runs) if i != main_i]
    for cd, cs, cn in side_cols:
        # Reflected sources always lie inside the interior band.
        assert mcs <= cs and cs + cn <= mcs + mcn, "side column run outside main band"

    def kernel(x_ref, o_ref):
        # Stage A: row gather straight from x into the main column band of o.
        for rd, rs, rn in row_runs:
            o_ref[:, rd:rd + rn, mcd:mcd + mcn] = x_ref[:, rs:rs + rn, mcs:mcs + mcn]
        # Stage B: reflected column strips, read back from the interior band.
        # (The handful of single-lane strips could be batched with an XLU flip,
        #  but they are a tiny fraction of the data for realistic pads.)
        for cd, cs, cn in side_cols:
            src = mcd + (cs - mcs)
            o_ref[:, :, cd:cd + cn] = o_ref[:, :, src:src + cn]

    return kernel


def _reflect_pad_jnp(x, diff_h, diff_w):
    """Non-Pallas reflect/crop path on NCHW (mixed signs allowed per axis)."""
    top = diff_h // 2
    bottom = diff_h - top
    left = diff_w // 2
    right = diff_w - left
    y = x
    if top >= 0:
        y = jnp.pad(y, ((0, 0), (0, 0), (top, bottom), (0, 0)), mode="reflect")
    else:
        y = y[:, :, -top:y.shape[2] + bottom, :]
    if left >= 0:
        y = jnp.pad(y, ((0, 0), (0, 0), (0, 0), (left, right)), mode="reflect")
    else:
        y = y[:, :, :, -left:y.shape[3] + right]
    return y


class AdjustLayerPallas:
    """Pallas port of AdjustLayer. No learnable parameters.

    use_pallas: True  -> always use the Pallas kernel on the reflect branch,
                False -> always use jnp.pad,
                None  -> auto (Pallas only when the tensor is big enough).
    batch_tile: optional override of the N*C grid tile (tests).
    """

    def __init__(self, in_height, in_width, out_height, out_width,
                 use_pallas=None, batch_tile=None):
        self.diff_height = out_height - 2 * in_height
        self.diff_width = out_width - 2 * in_width
        self._use_pallas = use_pallas
        self._batch_tile = batch_tile

    def __call__(self, x):
        dh, dw = self.diff_height, self.diff_width
        if dh == 0 and dw == 0:
            # Identity: return the input unchanged, as in PyTorch.
            return x
        if dh > 0 or dw > 0:
            # Reflect-pad branch (possibly with a crop on the other axis).
            return self._reflect_pad(x)
        # Crop branch: zero-compute slice; bypass Pallas so XLA fuses it for free.
        N, C, H, W = x.shape
        top = (-dh) // 2
        bottom = -dh - top
        left = (-dw) // 2
        right = -dw - left
        return x[:, :, top:H - bottom, left:W - right]

    def _reflect_pad(self, x):
        N, C, H, W = x.shape
        dh, dw = self.diff_height, self.diff_width
        top = dh // 2
        bottom = dh - top
        left = dw // 2
        right = dw - left
        # Same constraint as PyTorch's reflection pad: pad < input dimension.
        if max(top, bottom, 0) >= H or max(left, right, 0) >= W:
            raise ValueError("reflect padding must be smaller than the input dimension")

        itemsize = x.dtype.itemsize
        use_pallas = self._use_pallas
        if use_pallas is None:
            use_pallas = x.size * itemsize >= _PALLAS_MIN_BYTES
        if not use_pallas:
            return _reflect_pad_jnp(x, dh, dw)

        row_idx = _reflect_indices(H, top, bottom)
        col_idx = _reflect_indices(W, left, right)
        H_out, W_out = len(row_idx), len(col_idx)
        row_runs = _runs(row_idx)
        col_runs = _runs(col_idx)

        B = N * C
        tb = self._batch_tile
        if tb is None:
            tb = _pick_batch_tile(B, H, W, H_out, W_out, itemsize)
            if tb is None:
                # Blocks can't fit the VMEM budget -> safe fallback.
                return _reflect_pad_jnp(x, dh, dw)
        if B % tb != 0:
            raise ValueError("batch_tile must divide N*C")

        # Free leading-dim reshape: same contiguous NCHW buffer, no transpose.
        x_b = x.reshape(B, H, W)

        out = pl.pallas_call(
            _make_pad_kernel(row_runs, col_runs),
            out_shape=jax.ShapeDtypeStruct((B, H_out, W_out), x.dtype),
            grid=(B // tb,),
            # Last two dims equal the full array dims -> (8,128) rule satisfied.
            in_specs=[pl.BlockSpec((tb, H, W), lambda b: (b, 0, 0))],
            out_specs=pl.BlockSpec((tb, H_out, W_out), lambda b: (b, 0, 0)),
            compiler_params=pltpu.CompilerParams(
                dimension_semantics=("parallel",),
                vmem_limit_bytes=_VMEM_LIMIT_BYTES,
            ),
        )(x_b)

        return out.reshape(N, C, H_out, W_out)


def _ref_forward(x, diff_h, diff_w):
    """Pure-JAX reference reproducing the PyTorch forward (incl. mixed-sign pads)."""
    if diff_h == 0 and diff_w == 0:
        return x
    if diff_h > 0 or diff_w > 0:
        return _reflect_pad_jnp(x, diff_h, diff_w)
    top = (-diff_h) // 2
    bottom = -diff_h - top
    left = (-diff_w) // 2
    right = -diff_w - left
    return x[:, :, top:x.shape[2] - bottom, left:x.shape[3] - right]


if __name__ == "__main__":
    key = jax.random.PRNGKey(0)
    k1, k2 = jax.random.split(key)

    N, C = 2, 4
    in_h, in_w = 8, 8                                   # -> x spatial = (16, 16)
    x = jax.random.normal(k1, (N, C, 2 * in_h, 2 * in_w), dtype=jnp.float32)

    # Case 1: reflect-pad both axes (+4/+4) -> Pallas kernel (forced on small input).
    layer_pad = AdjustLayerPallas(in_h, in_w, 20, 20, use_pallas=True)
    y_pad = jax.block_until_ready(layer_pad(x))
    assert y_pad.shape == (N, C, 20, 20)
    assert bool(jnp.array_equal(
        y_pad, _ref_forward(x, layer_pad.diff_height, layer_pad.diff_width))), \
        "pad branch mismatch"

    # Case 2: asymmetric pads incl. a zero left pad (+3 height, +1 width).
    layer_asym = AdjustLayerPallas(in_h, in_w, 19, 17, use_pallas=True)
    y_asym = jax.block_until_ready(layer_asym(x))
    assert y_asym.shape == (N, C, 19, 17)
    assert bool(jnp.array_equal(
        y_asym, _ref_forward(x, layer_asym.diff_height, layer_asym.diff_width))), \
        "asymmetric pad branch mismatch"

    # Case 3: mixed sign (reflect height, crop width) -> Pallas kernel path.
    layer_mix = AdjustLayerPallas(in_h, in_w, 20, 12, use_pallas=True)
    y_mix = jax.block_until_ready(layer_mix(x))
    assert y_mix.shape == (N, C, 20, 12)
    assert bool(jnp.array_equal(
        y_mix, _ref_forward(x, layer_mix.diff_height, layer_mix.diff_width))), \
        "mixed pad/crop branch mismatch"

    # Case 4: crop (diff = -4 on each axis) -> pure slice, no Pallas.
    layer_crop = AdjustLayerPallas(in_h, in_w, 12, 12)
    y_crop = jax.block_until_ready(layer_crop(x))
    assert y_crop.shape == (N, C, 12, 12)
    assert bool(jnp.array_equal(
        y_crop, _ref_forward(x, layer_crop.diff_height, layer_crop.diff_width))), \
        "crop branch mismatch"

    # Case 5: identity (out == 2*in) -> returns x unchanged.
    layer_id = AdjustLayerPallas(in_h, in_w, 16, 16)
    y_id = jax.block_until_ready(layer_id(x))
    assert bool(jnp.array_equal(y_id, x)), "identity branch mismatch"

    # Case 6: larger tensor through the auto path (multi-step batched grid).
    x_big = jax.random.normal(k2, (2, 256, 32, 32), dtype=jnp.float32)   # 2 MiB
    layer_big = AdjustLayerPallas(16, 16, 36, 36)                        # diff +4/+4
    y_big = jax.block_until_ready(layer_big(x_big))
    assert y_big.shape == (2, 256, 36, 36)
    assert bool(jnp.array_equal(
        y_big, _ref_forward(x_big, layer_big.diff_height, layer_big.diff_width))), \
        "large auto-path pad mismatch"

    print("KERNEL_OK")
</pallas_src>

<mosaic_0001>
module attributes {stable_mosaic.version = 11 : i64} {
  func.func @kernel(%arg0: i32, %arg1: memref<4x16x16xf32, #tpu.memory_space<vmem>>, %arg2: memref<4x20x20xf32, #tpu.memory_space<vmem>>) attributes {dimension_semantics = [#tpu.dimension_semantics<parallel>], iteration_bounds = array<i64: 2>, scalar_prefetch = 0 : i64, scratch_operands = 0 : i64, tpu.core_type = #tpu.core_type<tc>, window_params = [{transform_indices = @transform_0, window_bounds = array<i64: 4, 16, 16>}, {transform_indices = @transform_1, window_bounds = array<i64: 4, 20, 20>}]} {
    %c0 = arith.constant 0 : index
    %c2 = arith.constant 2 : index
    %c0_0 = arith.constant 0 : index
    %0 = vector.load %arg1[%c0, %c2, %c0_0] : memref<4x16x16xf32, #tpu.memory_space<vmem>>, vector<4x1x16xf32>
    %c0_1 = arith.constant 0 : index
    %c0_2 = arith.constant 0 : index
    %c2_3 = arith.constant 2 : index
    %1 = vector.load %arg2[%c0_1, %c0_2, %c2_3] : memref<4x20x20xf32, #tpu.memory_space<vmem>>, vector<4x1x16xf32>
    tpu.vector_store %arg2[%c0_1, %c0_2, %c2_3], %0 {strides = array<i32>} : memref<4x20x20xf32, #tpu.memory_space<vmem>>, vector<4x1x16xf32>,
    %c0_4 = arith.constant 0 : index
    %c1 = arith.constant 1 : index
    %c0_5 = arith.constant 0 : index
    %2 = vector.load %arg1[%c0_4, %c1, %c0_5] : memref<4x16x16xf32, #tpu.memory_space<vmem>>, vector<4x1x16xf32>
    %c0_6 = arith.constant 0 : index
    %c1_7 = arith.constant 1 : index
    %c2_8 = arith.constant 2 : index
    %3 = vector.load %arg2[%c0_6, %c1_7, %c2_8] : memref<4x20x20xf32, #tpu.memory_space<vmem>>, vector<4x1x16xf32>
    tpu.vector_store %arg2[%c0_6, %c1_7, %c2_8], %2 {strides = array<i32>} : memref<4x20x20xf32, #tpu.memory_space<vmem>>, vector<4x1x16xf32>,
    %c0_9 = arith.constant 0 : index
    %c0_10 = arith.constant 0 : index
    %c0_11 = arith.constant 0 : index
    %4 = vector.load %arg1[%c0_9, %c0_10, %c0_11] : memref<4x16x16xf32, #tpu.memory_space<vmem>>, vector<4x16x16xf32>
    %c0_12 = arith.constant 0 : index
    %c2_13 = arith.constant 2 : index
    %c2_14 = arith.constant 2 : index
    %5 = vector.load %arg2[%c0_12, %c2_13, %c2_14] : memref<4x20x20xf32, #tpu.memory_space<vmem>>, vector<4x16x16xf32>
    tpu.vector_store %arg2[%c0_12, %c2_13, %c2_14], %4 {strides = array<i32>} : memref<4x20x20xf32, #tpu.memory_space<vmem>>, vector<4x16x16xf32>,
    %c0_15 = arith.constant 0 : index
    %c14 = arith.constant 14 : index
    %c0_16 = arith.constant 0 : index
    %6 = vector.load %arg1[%c0_15, %c14, %c0_16] : memref<4x16x16xf32, #tpu.memory_space<vmem>>, vector<4x1x16xf32>
    %c0_17 = arith.constant 0 : index
    %c18 = arith.constant 18 : index
    %c2_18 = arith.constant 2 : index
    %7 = vector.load %arg2[%c0_17, %c18, %c2_18] : memref<4x20x20xf32, #tpu.memory_space<vmem>>, vector<4x1x16xf32>
    tpu.vector_store %arg2[%c0_17, %c18, %c2_18], %6 {strides = array<i32>} : memref<4x20x20xf32, #tpu.memory_space<vmem>>, vector<4x1x16xf32>,
    %c0_19 = arith.constant 0 : index
    %c13 = arith.constant 13 : index
    %c0_20 = arith.constant 0 : index
    %8 = vector.load %arg1[%c0_19, %c13, %c0_20] : memref<4x16x16xf32, #tpu.memory_space<vmem>>, vector<4x1x16xf32>
    %c0_21 = arith.constant 0 : index
    %c19 = arith.constant 19 : index
    %c2_22 = arith.constant 2 : index
    %9 = vector.load %arg2[%c0_21, %c19, %c2_22] : memref<4x20x20xf32, #tpu.memory_space<vmem>>, vector<4x1x16xf32>
    tpu.vector_store %arg2[%c0_21, %c19, %c2_22], %8 {strides = array<i32>} : memref<4x20x20xf32, #tpu.memory_space<vmem>>, vector<4x1x16xf32>,
    %c0_23 = arith.constant 0 : index
    %c0_24 = arith.constant 0 : index
    %c4 = arith.constant 4 : index
    %10 = vector.load %arg2[%c0_23, %c0_24, %c4] : memref<4x20x20xf32, #tpu.memory_space<vmem>>, vector<4x20x1xf32>
    %c0_25 = arith.constant 0 : index
    %c0_26 = arith.constant 0 : index
    %c0_27 = arith.constant 0 : index
    %11 = vector.load %arg2[%c0_25, %c0_26, %c0_27] : memref<4x20x20xf32, #tpu.memory_space<vmem>>, vector<4x20x1xf32>
    tpu.vector_store %arg2[%c0_25, %c0_26, %c0_27], %10 {strides = array<i32>} : memref<4x20x20xf32, #tpu.memory_space<vmem>>, vector<4x20x1xf32>,
    %c0_28 = arith.constant 0 : index
    %c0_29 = arith.constant 0 : index
    %c3 = arith.constant 3 : index
    %12 = vector.load %arg2[%c0_28, %c0_29, %c3] : memref<4x20x20xf32, #tpu.memory_space<vmem>>, vector<4x20x1xf32>
    %c0_30 = arith.constant 0 : index
    %c0_31 = arith.constant 0 : index
    %c1_32 = arith.constant 1 : index
    %13 = vector.load %arg2[%c0_30, %c0_31, %c1_32] : memref<4x20x20xf32, #tpu.memory_space<vmem>>, vector<4x20x1xf32>
    tpu.vector_store %arg2[%c0_30, %c0_31, %c1_32], %12 {strides = array<i32>} : memref<4x20x20xf32, #tpu.memory_space<vmem>>, vector<4x20x1xf32>,
    %c0_33 = arith.constant 0 : index
    %c0_34 = arith.constant 0 : index
    %c16 = arith.constant 16 : index
    %14 = vector.load %arg2[%c0_33, %c0_34, %c16] : memref<4x20x20xf32, #tpu.memory_space<vmem>>, vector<4x20x1xf32>
    %c0_35 = arith.constant 0 : index
    %c0_36 = arith.constant 0 : index
    %c18_37 = arith.constant 18 : index
    %15 = vector.load %arg2[%c0_35, %c0_36, %c18_37] : memref<4x20x20xf32, #tpu.memory_space<vmem>>, vector<4x20x1xf32>
    tpu.vector_store %arg2[%c0_35, %c0_36, %c18_37], %14 {strides = array<i32>} : memref<4x20x20xf32, #tpu.memory_space<vmem>>, vector<4x20x1xf32>,
    %c0_38 = arith.constant 0 : index
    %c0_39 = arith.constant 0 : index
    %c15 = arith.constant 15 : index
    %16 = vector.load %arg2[%c0_38, %c0_39, %c15] : memref<4x20x20xf32, #tpu.memory_space<vmem>>, vector<4x20x1xf32>
    %c0_40 = arith.constant 0 : index
    %c0_41 = arith.constant 0 : index
    %c19_42 = arith.constant 19 : index
    %17 = vector.load %arg2[%c0_40, %c0_41, %c19_42] : memref<4x20x20xf32, #tpu.memory_space<vmem>>, vector<4x20x1xf32>
    tpu.vector_store %arg2[%c0_40, %c0_41, %c19_42], %16 {strides = array<i32>} : memref<4x20x20xf32, #tpu.memory_space<vmem>>, vector<4x20x1xf32>,
    return
  }
  func.func @transform_0(%arg0: i32) -> (i32, i32, i32) {
    %c0_i32 = arith.constant 0 : i32
    %c0_i32_0 = arith.constant 0 : i32
    %c0_i32_1 = arith.constant 0 : i32
    return %arg0, %c0_i32, %c0_i32_0 : i32, i32, i32
  }
  func.func @transform_1(%arg0: i32) -> (i32, i32, i32) {
    %c0_i32 = arith.constant 0 : i32
    %c0_i32_0 = arith.constant 0 : i32
    %c0_i32_1 = arith.constant 0 : i32
    return %arg0, %c0_i32, %c0_i32_0 : i32, i32, i32
  }
}

</mosaic_0001>

<llo_original>
// kernel: tpu_custom_call.1
$region0: #{tpu_custom_call.1}
  #allocation0 [shape = 'u32[]', space=smem, size = 0x4, offset = 0x4, fixed_abs, tag = 'smem constant byte address 0x4 - core index']
  #allocation1 [shape = 'u32[72,128]{1,0:T(1,128)}', space=vmem, size = 0x9000, scoped, tag = 'internal scratch']
  %s0 = inlined_call_operand.hbm [shape: f32[8,16,16], index: 0, kind: input, shape index: {}]
  %s1 = inlined_call_operand.vmem [shape: f32[8,20,20], index: 1, kind: output, shape index: {}]
  %s2 = sld [smem:[#allocation0]]
  $region41: #{tpu_custom_call.1} parent=0
    _
  %s4 = ssub.s32 1, %s2
  %s5 = scalar_select 0, %s4, %s2
  $region1: #{tpu_custom_call.1} parent=0
    #allocation2 [shape = 'u8[65536]{0}', space=vmem, size = 0x10000, scoped, tag = 'input window, operand 0']
    #allocation3 [shape = 's32[2]{0}', space=sflag, size = 0x8, scoped, tag = 'scoped memory for tpu_custom_call.1']
    %6 = vsyncpa [#allocation3], 0
    %s7 = scalar_lea.sflag [#allocation3], 1
    %8 = vsyncpa %s7, 0
    loop: start=0, step=1, limit=4
    $region2: #{tpu_custom_call.1} parent=1 // loop_pre_header
      _
    $region3: #{tpu_custom_call.1} parent=1 // loop_header
      %s10 = sphi 0, %s14
      %p11 = scmp.ge.s32.totalorder %s10, 4
      %s20 = sphi 0, %s22
      %s23 = sphi 0, %s20
      %s24 = sphi 0, %s23
      %s40 = sphi 0, %s24
      %s46 = sphi 0, %s48
      %s49 = sphi 0, %s46
      %s50 = sphi 0, %s49
      %s66 = sphi 0, %s50
    $region4: #{tpu_custom_call.1} parent=1 // loop_header_branch
      %13 = sbr.rel (%p11) target = $region8
    $region5: #{tpu_custom_call.1} parent=1 // loop_body
      %s15 = ssub.s32 %s10, 1
      %s16 = ssub.s32 %s10, 2
      %s17 = sadd.s32 %s10, 1
      %s18 = ssub.s32 %s10, %s17
      %p19 = scmp.eq.s32.totalorder %s18, 0
      %s21 = sadd.s32 %s20, 1
      %s22 = scalar_select %p19, %s20, %s21
      %p25 = pneg %p19
      %p26 = scmp.eq.s32.totalorder %s10, 1
      %p27 = por %p25, %p26
      %p28 = scmp.ne.s32.totalorder %s20, %s23
      %p29 = scmp.eq.s32.totalorder %s10, 0
      %p30 = por %p28, %p29
      %p31 = scmp.ne.s32.totalorder %s20, %s23
      %p32 = scmp.eq.s32.totalorder %s15, 1
      %p33 = por %p31, %p32
      %p34 = scmp.ne.s32.totalorder %s23, %s24
      %p35 = scmp.eq.s32.totalorder %s15, 0
      %p36 = por %p34, %p35
      %p37 = scmp.ne.s32.totalorder %s23, %s24
      %p38 = scmp.eq.s32.totalorder %s16, 1
      %p39 = por %p37, %p38
      %p41 = scmp.ne.s32.totalorder %s24, %s40
      %p42 = scmp.eq.s32.totalorder %s16, 0
      %p43 = por %p41, %p42
      %s44 = ssub.s32 %s10, %s17
      %p45 = scmp.eq.s32.totalorder %s44, 0
      %s47 = sadd.s32 %s46, 1
      %s48 = scalar_select %p45, %s46, %s47
      %p51 = pneg %p45
      %p52 = scmp.eq.s32.totalorder %s10, 1
      %p53 = por %p51, %p52
      %p54 = scmp.ne.s32.totalorder %s46, %s49
      %p55 = scmp.eq.s32.totalorder %s10, 0
      %p56 = por %p54, %p55
      %p57 = scmp.ne.s32.totalorder %s46, %s49
      %p58 = scmp.eq.s32.totalorder %s15, 1
      %p59 = por %p57, %p58
      %p60 = scmp.ne.s32.totalorder %s49, %s50
      %p61 = scmp.eq.s32.totalorder %s15, 0
      %p62 = por %p60, %p61
      %p63 = scmp.ne.s32.totalorder %s49, %s50
      %p64 = scmp.eq.s32.totalorder %s16, 1
      %p65 = por %p63, %p64
      %p67 = scmp.ne.s32.totalorder %s50, %s66
      %p68 = scmp.eq.s32.totalorder %s16, 0
      %p69 = por %p67, %p68
      %p70 = scmp.le.s32.totalorder 1, %s10
      %p71 = scmp.lt.s32.totalorder %s10, 3
      %p72 = pnand %p70, %p71
      %p73 = pneg %p72
      // Predicated region
      $region9: #{tpu_custom_call.1} parent=5 // pred_check
        _
      $region10: #{tpu_custom_call.1} parent=5 // pred_check_branch
        %75 = sbr.rel (%p72) target = $region12
      $region11: #{tpu_custom_call.1} parent=5 // pred_region
        %s76 = ssub.s32 %s10, 1
      $region12: #{tpu_custom_call.1} parent=5 // pred_fallthru
        _
      %p77 = scmp.lt.s32.totalorder %s10, 2
      // Predicated region
      $region13: #{tpu_custom_call.1} parent=5 // pred_check
        %p78 = pneg %p77
      $region14: #{tpu_custom_call.1} parent=5 // pred_check_branch
        %80 = sbr.rel (%p78) target = $region16
      $region15: #{tpu_custom_call.1} parent=5 // pred_region
        // Predicated region
        $region17: #{tpu_custom_call.1} parent=15 // pred_check
          %p81 = pneg %p30
        $region18: #{tpu_custom_call.1} parent=15 // pred_check_branch
          %83 = sbr.rel (%p81) target = $region20
        $region19: #{tpu_custom_call.1} parent=15 // pred_region
          %s84 = sand.u32 %s20, 1
          %s85 = scalar_lea.sflag [#allocation3], %s84
          %s86 = sand.u32 %s20, 1
          %s87 = smul.addr %s86, 64
          %s88 = scalar_lea.vmem [#allocation2], %s87
          %s89 = smul.u32 4, %s10
          %91 = vsyncadd %s85, 0
          %s92 = smul.addr %s89, 2
          %s93 = smul.addr %s92, 8
          %s94 = scalar_lea.hbm %s0, %s93
          %s95 = sshll.u32 %s94, 4
          %s96 = int_to_ptr.hbm [resolvable:$true] %s95
          %s97 = sshll.u32 %s88, 4
          %s98 = int_to_ptr.vmem [resolvable:$true] %s97
          %103 = dma.hbm_to_vmem [thread:$0]  %s96, 1024, %s98, %s85, 128, 128, 8
        $region20: #{tpu_custom_call.1} parent=15 // pred_fallthru
          _
      $region16: #{tpu_custom_call.1} parent=5 // pred_fallthru
        _
      %p104 = scmp.le.s32.totalorder 1, %s10
      %p105 = scmp.lt.s32.totalorder %s10, 3
      %p106 = pnand %p104, %p105
      %p107 = pneg %p106
      // Predicated region
      $region21: #{tpu_custom_call.1} parent=5 // pred_check
        _
      $region22: #{tpu_custom_call.1} parent=5 // pred_check_branch
        %109 = sbr.rel (%p106) target = $region24
      $region23: #{tpu_custom_call.1} parent=5 // pred_region
        %s110 = ssub.s32 %s10, 1
        %s111 = sand.u32 %s23, 1
        %s112 = scalar_lea.sflag [#allocation3], %s111
        %s113 = sand.u32 %s23, 1
        %s114 = smul.addr %s113, 64
        %s115 = scalar_lea.vmem [#allocation2], %s114
        // Predicated region
        $region25: #{tpu_custom_call.1} parent=23 // pred_check
          %p116 = pneg %p36
        $region26: #{tpu_custom_call.1} parent=23 // pred_check_branch
          %118 = sbr.rel (%p116) target = $region28
        $region27: #{tpu_custom_call.1} parent=23 // pred_region
          %120 = dma.done %s112, 1024
        $region28: #{tpu_custom_call.1} parent=23 // pred_fallthru
          _
        %s121 = sand.u32 %s23, 1
        %s122 = scalar_lea.sflag [#allocation3], %s121
        %s123 = sand.u32 %s23, 1
        %s124 = smul.addr %s123, 64
        %s125 = scalar_lea.vmem [#allocation2], %s124
        %p126 = pneg %p36
        %p127 = pneg %p33
        %p128 = pneg %p62
        %p129 = pneg %p59
        %s130 = smul.u32 4, %s15
        %p131 = scmp.lt.s32.totalorder %s130, 7
        %s132 = scalar_select %p131, %s130, 7
        %s133 = smul.addr %s132, 3
        %s134 = smul.addr %s133, 8
        %s135 = scalar_lea.vmem %s1, %s134
        %s136 = smul.u32 4, %s15
        %s137 = smul.u32 4, %s15
        %p138 = scmp.lt.s32.totalorder %s137, 7
        %s139 = scalar_select %p138, %s137, 7
        %s140 = smul.addr %s139, 3
        %s141 = smul.addr %s140, 8
        %s142 = scalar_lea.vmem %s1, %s141
        %s143 = smul.u32 4, %s15
        %v144 = vld [vmem:[%s115 + $0x2] sm:$0x1]
        %v145 = vld [vmem:[%s115 + $0x12] sm:$0x1]
        %v146 = vld [vmem:[%s115 + $0x22] sm:$0x1]
        %v147 = vld [vmem:[%s115 + $0x32] sm:$0x1]
        %152 = vrot.lane.b32.xlu0 %v144, 2
        %v153 = vpop.permute.xlu0 %152
        %154 = vrot.lane.b32.xlu0 %v145, 2
        %v155 = vpop.permute.xlu0 %154
        %156 = vrot.lane.b32.xlu0 %v146, 2
        %v157 = vpop.permute.xlu0 %156
        %158 = vrot.lane.b32.xlu0 %v147, 2
        %v159 = vpop.permute.xlu0 %158
        %vm164 = vcmask 139280
        %165 = vst.msk [vmem:[%s142] sm:$0x1] %vm164, %v153
        %166 = vst.msk [vmem:[%s142 + $0x18] sm:$0x1] %vm164, %v155
        %167 = vst.msk [vmem:[%s142 + $0x30] sm:$0x1] %vm164, %v157
        %168 = vst.msk [vmem:[%s142 + $0x48] sm:$0x1] %vm164, %v159
        %v169 = vld [vmem:[%s115 + $0x1] sm:$0x1]
        %v170 = vld [vmem:[%s115 + $0x11] sm:$0x1]
        %v171 = vld [vmem:[%s115 + $0x21] sm:$0x1]
        %v172 = vld [vmem:[%s115 + $0x31] sm:$0x1]
        %177 = vrot.lane.b32.xlu0 %v169, 2
        %v178 = vpop.permute.xlu0 %177
        %179 = vrot.lane.b32.xlu0 %v170, 2
        %v180 = vpop.permute.xlu0 %179
        %181 = vrot.lane.b32.xlu0 %v171, 2
        %v182 = vpop.permute.xlu0 %181
        %183 = vrot.lane.b32.xlu0 %v172, 2
        %v184 = vpop.permute.xlu0 %183
        %189 = vst.msk [vmem:[%s142 + $0x1] sm:$0x1] %vm164, %v178
        %190 = vst.msk [vmem:[%s142 + $0x19] sm:$0x1] %vm164, %v180
        %191 = vst.msk [vmem:[%s142 + $0x31] sm:$0x1] %vm164, %v182
        %192 = vst.msk [vmem:[%s142 + $0x49] sm:$0x1] %vm164, %v184
        %v193 = vld [vmem:[%s115] sm:$0xff]
        %v194 = vld [vmem:[%s115 + $0x8] sm:$0xff]
        %v195 = vld [vmem:[%s115 + $0x10] sm:$0xff]
        %v196 = vld [vmem:[%s115 + $0x18] sm:$0xff]
        %v197 = vld [vmem:[%s115 + $0x20] sm:$0xff]
        %v198 = vld [vmem:[%s115 + $0x28] sm:$0xff]
        %v199 = vld [vmem:[%s115 + $0x30] sm:$0xff]
        %v200 = vld [vmem:[%s115 + $0x38] sm:$0xff]
        %209 = vrot.lane.b32.xlu0 %v193, 2
        %v210 = vpop.permute.xlu0 %209
        %211 = vrot.lane.b32.xlu0 %v194, 2
        %v212 = vpop.permute.xlu0 %211
        %213 = vrot.lane.b32.xlu0 %v195, 2
        %v214 = vpop.permute.xlu0 %213
        %215 = vrot.lane.b32.xlu0 %v196, 2
        %v216 = vpop.permute.xlu0 %215
        %217 = vrot.lane.b32.xlu0 %v197, 2
        %v218 = vpop.permute.xlu0 %217
        %219 = vrot.lane.b32.xlu0 %v198, 2
        %v220 = vpop.permute.xlu0 %219
        %221 = vrot.lane.b32.xlu0 %v199, 2
        %v222 = vpop.permute.xlu0 %221
        %223 = vrot.lane.b32.xlu0 %v200, 2
        %v224 = vpop.permute.xlu0 %223
        %vm233 = vcmask 146448
        %234 = vst.msk [vmem:[%s142 + $0x2] sm:$0xff] %vm233, %v210
        %235 = vst.msk [vmem:[%s142 + $0xa] sm:$0xff] %vm233, %v212
        %236 = vst.msk [vmem:[%s142 + $0x1a] sm:$0xff] %vm233, %v214
        %237 = vst.msk [vmem:[%s142 + $0x22] sm:$0xff] %vm233, %v216
        %238 = vst.msk [vmem:[%s142 + $0x32] sm:$0xff] %vm233, %v218
        %239 = vst.msk [vmem:[%s142 + $0x3a] sm:$0xff] %vm233, %v220
        %240 = vst.msk [vmem:[%s142 + $0x4a] sm:$0xff] %vm233, %v222
        %241 = vst.msk [vmem:[%s142 + $0x52] sm:$0xff] %vm233, %v224
        %v242 = vld [vmem:[%s115 + $0xe] sm:$0x1]
        %v243 = vld [vmem:[%s115 + $0x1e] sm:$0x1]
        %v244 = vld [vmem:[%s115 + $0x2e] sm:$0x1]
        %v245 = vld [vmem:[%s115 + $0x3e] sm:$0x1]
        %250 = vrot.lane.b32.xlu0 %v242, 2
        %v251 = vpop.permute.xlu0 %250
        %252 = vrot.lane.b32.xlu0 %v243, 2
        %v253 = vpop.permute.xlu0 %252
        %254 = vrot.lane.b32.xlu0 %v244, 2
        %v255 = vpop.permute.xlu0 %254
        %256 = vrot.lane.b32.xlu0 %v245, 2
        %v257 = vpop.permute.xlu0 %256
        %262 = vst.msk [vmem:[%s142 + $0x12] sm:$0x1] %vm164, %v251
        %263 = vst.msk [vmem:[%s142 + $0x2a] sm:$0x1] %vm164, %v253
        %264 = vst.msk [vmem:[%s142 + $0x42] sm:$0x1] %vm164, %v255
        %265 = vst.msk [vmem:[%s142 + $0x5a] sm:$0x1] %vm164, %v257
        %v266 = vld [vmem:[%s115 + $0xd] sm:$0x1]
        %v267 = vld [vmem:[%s115 + $0x1d] sm:$0x1]
        %v268 = vld [vmem:[%s115 + $0x2d] sm:$0x1]
        %v269 = vld [vmem:[%s115 + $0x3d] sm:$0x1]
        %274 = vrot.lane.b32.xlu0 %v266, 2
        %v275 = vpop.permute.xlu0 %274
        %276 = vrot.lane.b32.xlu0 %v267, 2
        %v277 = vpop.permute.xlu0 %276
        %278 = vrot.lane.b32.xlu0 %v268, 2
        %v279 = vpop.permute.xlu0 %278
        %280 = vrot.lane.b32.xlu0 %v269, 2
        %v281 = vpop.permute.xlu0 %280
        %286 = vst.msk [vmem:[%s142 + $0x13] sm:$0x1] %vm164, %v275
        %287 = vst.msk [vmem:[%s142 + $0x2b] sm:$0x1] %vm164, %v277
        %288 = vst.msk [vmem:[%s142 + $0x43] sm:$0x1] %vm164, %v279
        %289 = vst.msk [vmem:[%s142 + $0x5b] sm:$0x1] %vm164, %v281
        %v290 = vld [vmem:[%s142] sm:$0xff]
        %v291 = vld [vmem:[%s142 + $0x8] sm:$0xff]
        %v292 = vld [vmem:[%s142 + $0x10] sm:$0xf]
        %v293 = vld [vmem:[%s142 + $0x18] sm:$0xff]
        %v294 = vld [vmem:[%s142 + $0x20] sm:$0xff]
        %v295 = vld [vmem:[%s142 + $0x28] sm:$0xf]
        %v296 = vld [vmem:[%s142 + $0x30] sm:$0xff]
        %v297 = vld [vmem:[%s142 + $0x38] sm:$0xff]
        %v298 = vld [vmem:[%s142 + $0x40] sm:$0xf]
        %v299 = vld [vmem:[%s142 + $0x48] sm:$0xff]
        %v300 = vld [vmem:[%s142 + $0x50] sm:$0xff]
        %v301 = vld [vmem:[%s142 + $0x58] sm:$0xf]
        %314 = vrot.lane.b32.xlu0 %v290, 124
        %v315 = vpop.permute.xlu0 %314
        %316 = vrot.lane.b32.xlu0 %v291, 124
        %v317 = vpop.permute.xlu0 %316
        %318 = vrot.lane.b32.xlu0 %v292, 124
        %v319 = vpop.permute.xlu0 %318
        %320 = vrot.lane.b32.xlu0 %v293, 124
        %v321 = vpop.permute.xlu0 %320
        %322 = vrot.lane.b32.xlu0 %v294, 124
        %v323 = vpop.permute.xlu0 %322
        %324 = vrot.lane.b32.xlu0 %v295, 124
        %v325 = vpop.permute.xlu0 %324
        %326 = vrot.lane.b32.xlu0 %v296, 124
        %v327 = vpop.permute.xlu0 %326
        %328 = vrot.lane.b32.xlu0 %v297, 124
        %v329 = vpop.permute.xlu0 %328
        %330 = vrot.lane.b32.xlu0 %v298, 124
        %v331 = vpop.permute.xlu0 %330
        %332 = vrot.lane.b32.xlu0 %v299, 124
        %v333 = vpop.permute.xlu0 %332
        %334 = vrot.lane.b32.xlu0 %v300, 124
        %v335 = vpop.permute.xlu0 %334
        %336 = vrot.lane.b32.xlu0 %v301, 124
        %v337 = vpop.permute.xlu0 %336
        %vm350 = vcmask 7168
        %351 = vst.msk [vmem:[%s142] sm:$0xff] %vm350, %v315
        %352 = vst.msk [vmem:[%s142 + $0x8] sm:$0xff] %vm350, %v317
        %vm353 = vcmask 3072
        %354 = vst.msk [vmem:[%s142 + $0x10] sm:$0xf] %vm353, %v319
        %355 = vst.msk [vmem:[%s142 + $0x18] sm:$0xff] %vm350, %v321
        %356 = vst.msk [vmem:[%s142 + $0x20] sm:$0xff] %vm350, %v323
        %357 = vst.msk [vmem:[%s142 + $0x28] sm:$0xf] %vm353, %v325
        %358 = vst.msk [vmem:[%s142 + $0x30] sm:$0xff] %vm350, %v327
        %359 = vst.msk [vmem:[%s142 + $0x38] sm:$0xff] %vm350, %v329
        %360 = vst.msk [vmem:[%s142 + $0x40] sm:$0xf] %vm353, %v331
        %361 = vst.msk [vmem:[%s142 + $0x48] sm:$0xff] %vm350, %v333
        %362 = vst.msk [vmem:[%s142 + $0x50] sm:$0xff] %vm350, %v335
        %363 = vst.msk [vmem:[%s142 + $0x58] sm:$0xf] %vm353, %v337
        %v364 = vld [vmem:[%s142] sm:$0xff]
        %v365 = vld [vmem:[%s142 + $0x8] sm:$0xff]
        %v366 = vld [vmem:[%s142 + $0x10] sm:$0xf]
        %v367 = vld [vmem:[%s142 + $0x18] sm:$0xff]
        %v368 = vld [vmem:[%s142 + $0x20] sm:$0xff]
        %v369 = vld [vmem:[%s142 + $0x28] sm:$0xf]
        %v370 = vld [vmem:[%s142 + $0x30] sm:$0xff]
        %v371 = vld [vmem:[%s142 + $0x38] sm:$0xff]
        %v372 = vld [vmem:[%s142 + $0x40] sm:$0xf]
        %v373 = vld [vmem:[%s142 + $0x48] sm:$0xff]
        %v374 = vld [vmem:[%s142 + $0x50] sm:$0xff]
        %v375 = vld [vmem:[%s142 + $0x58] sm:$0xf]
        %388 = vrot.lane.b32.xlu0 %v364, 126
        %v389 = vpop.permute.xlu0 %388
        %390 = vrot.lane.b32.xlu0 %v365, 126
        %v391 = vpop.permute.xlu0 %390
        %392 = vrot.lane.b32.xlu0 %v366, 126
        %v393 = vpop.permute.xlu0 %392
        %394 = vrot.lane.b32.xlu0 %v367, 126
        %v395 = vpop.permute.xlu0 %394
        %396 = vrot.lane.b32.xlu0 %v368, 126
        %v397 = vpop.permute.xlu0 %396
        %398 = vrot.lane.b32.xlu0 %v369, 126
        %v399 = vpop.permute.xlu0 %398
        %400 = vrot.lane.b32.xlu0 %v370, 126
        %v401 = vpop.permute.xlu0 %400
        %402 = vrot.lane.b32.xlu0 %v371, 126
        %v403 = vpop.permute.xlu0 %402
        %404 = vrot.lane.b32.xlu0 %v372, 126
        %v405 = vpop.permute.xlu0 %404
        %406 = vrot.lane.b32.xlu0 %v373, 126
        %v407 = vpop.permute.xlu0 %406
        %408 = vrot.lane.b32.xlu0 %v374, 126
        %v409 = vpop.permute.xlu0 %408
        %410 = vrot.lane.b32.xlu0 %v375, 126
        %v411 = vpop.permute.xlu0 %410
        %vm424 = vcmask 15368
        %425 = vst.msk [vmem:[%s142] sm:$0xff] %vm424, %v389
        %426 = vst.msk [vmem:[%s142 + $0x8] sm:$0xff] %vm424, %v391
        %vm427 = vcmask 11272
        %428 = vst.msk [vmem:[%s142 + $0x10] sm:$0xf] %vm427, %v393
        %429 = vst.msk [vmem:[%s142 + $0x18] sm:$0xff] %vm424, %v395
        %430 = vst.msk [vmem:[%s142 + $0x20] sm:$0xff] %vm424, %v397
        %431 = vst.msk [vmem:[%s142 + $0x28] sm:$0xf] %vm427, %v399
        %432 = vst.msk [vmem:[%s142 + $0x30] sm:$0xff] %vm424, %v401
        %433 = vst.msk [vmem:[%s142 + $0x38] sm:$0xff] %vm424, %v403
        %434 = vst.msk [vmem:[%s142 + $0x40] sm:$0xf] %vm427, %v405
        %435 = vst.msk [vmem:[%s142 + $0x48] sm:$0xff] %vm424, %v407
        %436 = vst.msk [vmem:[%s142 + $0x50] sm:$0xff] %vm424, %v409
        %437 = vst.msk [vmem:[%s142 + $0x58] sm:$0xf] %vm427, %v411
        %v438 = vld [vmem:[%s142] sm:$0xff]
        %v439 = vld [vmem:[%s142 + $0x8] sm:$0xff]
        %v440 = vld [vmem:[%s142 + $0x10] sm:$0xf]
        %v441 = vld [vmem:[%s142 + $0x18] sm:$0xff]
        %v442 = vld [vmem:[%s142 + $0x20] sm:$0xff]
        %v443 = vld [vmem:[%s142 + $0x28] sm:$0xf]
        %v444 = vld [vmem:[%s142 + $0x30] sm:$0xff]
        %v445 = vld [vmem:[%s142 + $0x38] sm:$0xff]
        %v446 = vld [vmem:[%s142 + $0x40] sm:$0xf]
        %v447 = vld [vmem:[%s142 + $0x48] sm:$0xff]
        %v448 = vld [vmem:[%s142 + $0x50] sm:$0xff]
        %v449 = vld [vmem:[%s142 + $0x58] sm:$0xf]
        %462 = vrot.lane.b32.xlu0 %v438, 2
        %v463 = vpop.permute.xlu0 %462
        %464 = vrot.lane.b32.xlu0 %v439, 2
        %v465 = vpop.permute.xlu0 %464
        %466 = vrot.lane.b32.xlu0 %v440, 2
        %v467 = vpop.permute.xlu0 %466
        %468 = vrot.lane.b32.xlu0 %v441, 2
        %v469 = vpop.permute.xlu0 %468
        %470 = vrot.lane.b32.xlu0 %v442, 2
        %v471 = vpop.permute.xlu0 %470
        %472 = vrot.lane.b32.xlu0 %v443, 2
        %v473 = vpop.permute.xlu0 %472
        %474 = vrot.lane.b32.xlu0 %v444, 2
        %v475 = vpop.permute.xlu0 %474
        %476 = vrot.lane.b32.xlu0 %v445, 2
        %v477 = vpop.permute.xlu0 %476
        %478 = vrot.lane.b32.xlu0 %v446, 2
        %v479 = vpop.permute.xlu0 %478
        %480 = vrot.lane.b32.xlu0 %v447, 2
        %v481 = vpop.permute.xlu0 %480
        %482 = vrot.lane.b32.xlu0 %v448, 2
        %v483 = vpop.permute.xlu0 %482
        %484 = vrot.lane.b32.xlu0 %v449, 2
        %v485 = vpop.permute.xlu0 %484
        %vm498 = vcmask 154768
        %499 = vst.msk [vmem:[%s142] sm:$0xff] %vm498, %v463
        %500 = vst.msk [vmem:[%s142 + $0x8] sm:$0xff] %vm498, %v465
        %vm501 = vcmask 150672
        %502 = vst.msk [vmem:[%s142 + $0x10] sm:$0xf] %vm501, %v467
        %503 = vst.msk [vmem:[%s142 + $0x18] sm:$0xff] %vm498, %v469
        %504 = vst.msk [vmem:[%s142 + $0x20] sm:$0xff] %vm498, %v471
        %505 = vst.msk [vmem:[%s142 + $0x28] sm:$0xf] %vm501, %v473
        %506 = vst.msk [vmem:[%s142 + $0x30] sm:$0xff] %vm498, %v475
        %507 = vst.msk [vmem:[%s142 + $0x38] sm:$0xff] %vm498, %v477
        %508 = vst.msk [vmem:[%s142 + $0x40] sm:$0xf] %vm501, %v479
        %509 = vst.msk [vmem:[%s142 + $0x48] sm:$0xff] %vm498, %v481
        %510 = vst.msk [vmem:[%s142 + $0x50] sm:$0xff] %vm498, %v483
        %511 = vst.msk [vmem:[%s142 + $0x58] sm:$0xf] %vm501, %v485
        %v512 = vld [vmem:[%s142] sm:$0xff]
        %v513 = vld [vmem:[%s142 + $0x8] sm:$0xff]
        %v514 = vld [vmem:[%s142 + $0x10] sm:$0xf]
        %v515 = vld [vmem:[%s142 + $0x18] sm:$0xff]
        %v516 = vld [vmem:[%s142 + $0x20] sm:$0xff]
        %v517 = vld [vmem:[%s142 + $0x28] sm:$0xf]
        %v518 = vld [vmem:[%s142 + $0x30] sm:$0xff]
        %v519 = vld [vmem:[%s142 + $0x38] sm:$0xff]
        %v520 = vld [vmem:[%s142 + $0x40] sm:$0xf]
        %v521 = vld [vmem:[%s142 + $0x48] sm:$0xff]
        %v522 = vld [vmem:[%s142 + $0x50] sm:$0xff]
        %v523 = vld [vmem:[%s142 + $0x58] sm:$0xf]
        %536 = vrot.lane.b32.xlu0 %v512, 4
        %v537 = vpop.permute.xlu0 %536
        %538 = vrot.lane.b32.xlu0 %v513, 4
        %v539 = vpop.permute.xlu0 %538
        %540 = vrot.lane.b32.xlu0 %v514, 4
        %v541 = vpop.permute.xlu0 %540
        %542 = vrot.lane.b32.xlu0 %v515, 4
        %v543 = vpop.permute.xlu0 %542
        %544 = vrot.lane.b32.xlu0 %v516, 4
        %v545 = vpop.permute.xlu0 %544
        %546 = vrot.lane.b32.xlu0 %v517, 4
        %v547 = vpop.permute.xlu0 %546
        %548 = vrot.lane.b32.xlu0 %v518, 4
        %v549 = vpop.permute.xlu0 %548
        %550 = vrot.lane.b32.xlu0 %v519, 4
        %v551 = vpop.permute.xlu0 %550
        %552 = vrot.lane.b32.xlu0 %v520, 4
        %v553 = vpop.permute.xlu0 %552
        %554 = vrot.lane.b32.xlu0 %v521, 4
        %v555 = vpop.permute.xlu0 %554
        %556 = vrot.lane.b32.xlu0 %v522, 4
        %v557 = vpop.permute.xlu0 %556
        %558 = vrot.lane.b32.xlu0 %v523, 4
        %v559 = vpop.permute.xlu0 %558
        %vm572 = vcmask 162968
        %573 = vst.msk [vmem:[%s142] sm:$0xff] %vm572, %v537
        %574 = vst.msk [vmem:[%s142 + $0x8] sm:$0xff] %vm572, %v539
        %vm575 = vcmask 158872
        %576 = vst.msk [vmem:[%s142 + $0x10] sm:$0xf] %vm575, %v541
        %577 = vst.msk [vmem:[%s142 + $0x18] sm:$0xff] %vm572, %v543
        %578 = vst.msk [vmem:[%s142 + $0x20] sm:$0xff] %vm572, %v545
        %579 = vst.msk [vmem:[%s142 + $0x28] sm:$0xf] %vm575, %v547
        %580 = vst.msk [vmem:[%s142 + $0x30] sm:$0xff] %vm572, %v549
        %581 = vst.msk [vmem:[%s142 + $0x38] sm:$0xff] %vm572, %v551
        %582 = vst.msk [vmem:[%s142 + $0x40] sm:$0xf] %vm575, %v553
        %583 = vst.msk [vmem:[%s142 + $0x48] sm:$0xff] %vm572, %v555
        %584 = vst.msk [vmem:[%s142 + $0x50] sm:$0xff] %vm572, %v557
        %585 = vst.msk [vmem:[%s142 + $0x58] sm:$0xf] %vm575, %v559
        %s586 = smul.u32 4, %s15
        %p587 = scmp.lt.s32.totalorder %s586, 7
        %s588 = scalar_select %p587, %s586, 7
        %s589 = smul.addr %s588, 3
        %s590 = smul.addr %s589, 8
        %s591 = scalar_lea.vmem %s1, %s590
        // Predicated region
        $region29: #{tpu_custom_call.1} parent=23 // pred_check
          %p592 = pneg %p59
        $region30: #{tpu_custom_call.1} parent=23 // pred_check_branch
          %594 = sbr.rel (%p592) target = $region32
        $region31: #{tpu_custom_call.1} parent=23 // pred_region
          %s595 = smul.u32 4, %s15
        $region32: #{tpu_custom_call.1} parent=23 // pred_fallthru
          _
      $region24: #{tpu_custom_call.1} parent=5 // pred_fallthru
        _
      %p596 = scmp.le.s32.totalorder 2, %s10
      // Predicated region
      $region33: #{tpu_custom_call.1} parent=5 // pred_check
        %p597 = pneg %p596
      $region34: #{tpu_custom_call.1} parent=5 // pred_check_branch
        %599 = sbr.rel (%p597) target = $region36
      $region35: #{tpu_custom_call.1} parent=5 // pred_region
        %s600 = ssub.s32 %s10, 2
        // Predicated region
        $region37: #{tpu_custom_call.1} parent=35 // pred_check
          %p601 = pneg %p65
        $region38: #{tpu_custom_call.1} parent=35 // pred_check_branch
          %603 = sbr.rel (%p601) target = $region40
        $region39: #{tpu_custom_call.1} parent=35 // pred_region
          %s604 = smul.u32 4, %s16
          %p605 = scmp.lt.s32.totalorder %s604, 7
          %s606 = scalar_select %p605, %s604, 7
          %s607 = smul.addr %s606, 3
          %s608 = smul.addr %s607, 8
          %s609 = scalar_lea.vmem %s1, %s608
        $region40: #{tpu_custom_call.1} parent=35 // pred_fallthru
          _
      $region36: #{tpu_custom_call.1} parent=5 // pred_fallthru
        _
    $region6: #{tpu_custom_call.1} parent=1 // loop_footer
      %s14 = sadd.s32 1, %s10
    $region7: #{tpu_custom_call.1} parent=1 // loop_footer_branch
      %9 = sbr.rel target = $region3
    $region8: #{tpu_custom_call.1} parent=1 // loop_exit
      _
    %610 = vsyncpa [#allocation3], 1
    %s611 = scalar_lea.sflag [#allocation3], 1
    %612 = vsyncpa %s611, 1

</llo_original>
